<compile_context>
chip_gen: v6e
topology: v6e:2x2x1
jax: 0.10.0
libtpu: 0.0.40
codegen_flags: <defaults>
</compile_context>

<pallas_src>
import functools

import jax
import jax.numpy as jnp
from jax.experimental import pallas as pl
from jax.experimental.pallas import tpu as pltpu

CLASSES = 18
EPSILON = 1e-07
_LANE = 128
_MAX_TILE_N = 1024


def _cdiv(a, b):
    return (a + b - 1) // b


def _round_up(a, b):
    return _cdiv(a, b) * b


def _f1_partial_kernel(pred_ref, label_ref, out_ref, tp_acc, p_acc, cnt_acc,
                       *, n_valid, tile_n, tiles_per_split, apply_mask):
    # pred_ref : (C, TILE_N) logits (class on sublane, batch on lane)
    # label_ref: (1, TILE_N) int32 labels (-1 for padded batch positions)
    # out_ref  : (1, C, 3) per-split partials [tp, colsum(p), count]
    i = pl.program_id(0)   # parallel split (maps to a TensorCore on v7x)
    j = pl.program_id(1)   # batch tile within the split (running reduction)

    @pl.when(j == 0)
    def _init():
        tp_acc[...] = jnp.zeros_like(tp_acc)
        p_acc[...] = jnp.zeros_like(p_acc)
        cnt_acc[...] = jnp.zeros_like(cnt_acc)

    x = pred_ref[...].astype(jnp.float32)            # (C, TILE_N)
    labels = label_ref[...]                          # (1, TILE_N) int32
    c, tn = x.shape

    # Numerically-stable softmax over the class (sublane) axis.
    m = jnp.max(x, axis=0, keepdims=True)            # (1, TILE_N)
    e = jnp.exp(x - m)                               # (C, TILE_N)
    # One exact reciprocal per batch element, then cheap VPU multiplies.
    inv = pl.reciprocal(jnp.sum(e, axis=0, keepdims=True), approx=False)
    p = e * inv                                      # (C, TILE_N)

    # One-hot via sublane iota vs. lane-broadcast labels (padded labels are -1
    # so they never match and contribute nothing to tp / counts).
    class_ids = jax.lax.broadcasted_iota(jnp.int32, (c, tn), 0)
    onehot = (class_ids == labels).astype(jnp.float32)

    if apply_mask:
        # Zero out padded batch columns so colsum(p) is unbiased.
        col = ((i * tiles_per_split + j) * tile_n
               + jax.lax.broadcasted_iota(jnp.int32, (1, tn), 1))
        valid = (col < n_valid).astype(jnp.float32)  # (1, TILE_N)
        p = p * valid

    # Running per-class partials (lane-wise; reduced over lanes only once).
    tp_acc[...] += onehot * p
    p_acc[...] += p
    cnt_acc[...] += onehot

    @pl.when(j == pl.num_programs(1) - 1)
    def _finalize():
        out_ref[0, :, 0:1] = jnp.sum(tp_acc[...], axis=1, keepdims=True)
        out_ref[0, :, 1:2] = jnp.sum(p_acc[...], axis=1, keepdims=True)
        out_ref[0, :, 2:3] = jnp.sum(cnt_acc[...], axis=1, keepdims=True)


def f1_loss(y_pred, y_true, classes=CLASSES, epsilon=EPSILON):
    assert y_pred.ndim == 2
    assert y_true.ndim == 1
    n, c = y_pred.shape
    assert c == classes

    # Lane-dense working layout: (C, N) logits, (1, N) labels.  Keep the
    # model's native dtype (e.g. bf16) for the logits; upcast inside the
    # kernel.
    x = y_pred.T
    labels = y_true.astype(jnp.int32).reshape(1, n)

    # Batch tile on the lane axis (>= 128, <= 1024 to amortize grid overhead
    # while keeping VMEM tiny on all generations including v7x).
    tile_n = int(min(_MAX_TILE_N, _round_up(n, _LANE)))
    num_tiles = _cdiv(n, tile_n)
    # Split the tile axis two ways so both v7x TensorCores do work.
    num_splits = 2 if num_tiles >= 2 else 1
    num_tiles = _round_up(num_tiles, num_splits)
    tiles_per_split = num_tiles // num_splits
    n_padded = num_tiles * tile_n

    if n_padded != n:
        x = jnp.pad(x, ((0, 0), (0, n_padded - n)))
        labels = jnp.pad(labels, ((0, 0), (0, n_padded - n)),
                         constant_values=-1)

    kernel = functools.partial(
        _f1_partial_kernel,
        n_valid=n,
        tile_n=tile_n,
        tiles_per_split=tiles_per_split,
        apply_mask=(n_padded != n),
    )

    partials = pl.pallas_call(
        kernel,
        out_shape=jax.ShapeDtypeStruct((num_splits, classes, 3), jnp.float32),
        grid_spec=pltpu.PrefetchScalarGridSpec(
            num_scalar_prefetch=0,
            grid=(num_splits, tiles_per_split),
            in_specs=[
                pl.BlockSpec((classes, tile_n),
                             lambda i, j: (0, i * tiles_per_split + j)),
                pl.BlockSpec((1, tile_n),
                             lambda i, j: (0, i * tiles_per_split + j)),
            ],
            out_specs=pl.BlockSpec((1, classes, 3), lambda i, j: (i, 0, 0)),
            scratch_shapes=[pltpu.VMEM((classes, tile_n), jnp.float32)] * 3,
        ),
        compiler_params=pltpu.CompilerParams(
            dimension_semantics=("parallel", "arbitrary")),
    )(x, labels)

    # Tiny O(classes) epilogue: combine per-split partials and apply the F1
    # formula (exactly the reference semantics, including the clip and the
    # mean over classes absent from the batch).
    red = jnp.sum(partials, axis=0)          # (C, 3)
    tp = red[:, 0]
    colsum = red[:, 1]
    counts = red[:, 2]
    fp = colsum - tp
    fn = counts - tp
    precision = tp / (tp + fp + epsilon)
    recall = tp / (tp + fn + epsilon)
    f1 = 2.0 * precision * recall / (precision + recall + epsilon)
    f1 = jnp.clip(f1, epsilon, 1.0 - epsilon)
    return 1.0 - jnp.mean(f1)


def _f1_loss_ref(y_pred, y_true, classes=CLASSES, eps=EPSILON):
    # Pure-JAX reference mirroring the PyTorch module.
    onehot = jax.nn.one_hot(y_true, classes, dtype=jnp.float32)
    p = jax.nn.softmax(y_pred.astype(jnp.float32), axis=1)
    tp = jnp.sum(onehot * p, axis=0)
    fp = jnp.sum((1.0 - onehot) * p, axis=0)
    fn = jnp.sum(onehot * (1.0 - p), axis=0)
    precision = tp / (tp + fp + eps)
    recall = tp / (tp + fn + eps)
    f1 = 2.0 * (precision * recall) / (precision + recall + eps)
    f1 = jnp.clip(f1, eps, 1.0 - eps)
    return 1.0 - jnp.mean(f1)


if __name__ == "__main__":
    key = jax.random.PRNGKey(0)

    # Small case (single tile, single split, padded + masked batch).
    k1, k2, k3, k4 = jax.random.split(key, 4)
    batch = 8
    y_pred = jax.random.normal(k1, (batch, CLASSES), dtype=jnp.float32)
    y_true = jax.random.randint(k2, (batch,), 0, CLASSES, dtype=jnp.int32)
    loss = f1_loss(y_pred, y_true)
    jax.block_until_ready(loss)
    ref = _f1_loss_ref(y_pred, y_true)
    assert jnp.allclose(loss, ref, atol=1e-5, rtol=1e-5), (loss, ref)

    # Multi-tile case (exercises the 2-way split, accumulation and the
    # partial-tile mask).
    batch2 = 2500
    y_pred2 = jax.random.normal(k3, (batch2, CLASSES), dtype=jnp.float32)
    y_true2 = jax.random.randint(k4, (batch2,), 0, CLASSES, dtype=jnp.int32)
    loss2 = f1_loss(y_pred2, y_true2)
    jax.block_until_ready(loss2)
    ref2 = _f1_loss_ref(y_pred2, y_true2)
    assert jnp.allclose(loss2, ref2, atol=1e-4, rtol=1e-4), (loss2, ref2)

    print("KERNEL_OK")
</pallas_src>

<mosaic_0001>
module attributes {stable_mosaic.version = 11 : i64} {
  func.func @_f1_partial_kernel(%arg0: i32, %arg1: i32, %arg2: memref<18x128xf32, #tpu.memory_space<vmem>>, %arg3: memref<1x128xi32, #tpu.memory_space<vmem>>, %arg4: memref<1x18x3xf32, #tpu.memory_space<vmem>>, %arg5: memref<18x128xf32, #tpu.memory_space<vmem>>, %arg6: memref<18x128xf32, #tpu.memory_space<vmem>>, %arg7: memref<18x128xf32, #tpu.memory_space<vmem>>) attributes {dimension_semantics = [#tpu.dimension_semantics<parallel>, #tpu.dimension_semantics<arbitrary>], iteration_bounds = array<i64: 1, 1>, scalar_prefetch = 0 : i64, scratch_operands = 3 : i64, tpu.core_type = #tpu.core_type<tc>, window_params = [{transform_indices = @transform_0, window_bounds = array<i64: 18, 128>}, {transform_indices = @transform_1, window_bounds = array<i64: 1, 128>}, {transform_indices = @transform_2, window_bounds = array<i64: 1, 18, 3>}]} {
    %c0_i32 = arith.constant 0 : i32
    %0 = arith.cmpi eq, %arg1, %c0_i32 : i32
    %1 = arith.extui %0 : i1 to i32
    %c0_i32_0 = arith.constant 0 : i32
    %2 = arith.cmpi ne, %1, %c0_i32_0 : i32
    scf.if %2 {
      %cst_19 = arith.constant 0.000000e+00 : f32
      %45 = vector.broadcast %cst_19 : f32 to vector<18x128xf32>
      %c0_20 = arith.constant 0 : index
      %c0_21 = arith.constant 0 : index
      %46 = vector.load %arg5[%c0_20, %c0_21] : memref<18x128xf32, #tpu.memory_space<vmem>>, vector<18x128xf32>
      tpu.vector_store %arg5[%c0_20, %c0_21], %45 {strides = array<i32>} : memref<18x128xf32, #tpu.memory_space<vmem>>, vector<18x128xf32>,
      %cst_22 = arith.constant 0.000000e+00 : f32
      %47 = vector.broadcast %cst_22 : f32 to vector<18x128xf32>
      %c0_23 = arith.constant 0 : index
      %c0_24 = arith.constant 0 : index
      %48 = vector.load %arg6[%c0_23, %c0_24] : memref<18x128xf32, #tpu.memory_space<vmem>>, vector<18x128xf32>
      tpu.vector_store %arg6[%c0_23, %c0_24], %47 {strides = array<i32>} : memref<18x128xf32, #tpu.memory_space<vmem>>, vector<18x128xf32>,
      %cst_25 = arith.constant 0.000000e+00 : f32
      %49 = vector.broadcast %cst_25 : f32 to vector<18x128xf32>
      %c0_26 = arith.constant 0 : index
      %c0_27 = arith.constant 0 : index
      %50 = vector.load %arg7[%c0_26, %c0_27] : memref<18x128xf32, #tpu.memory_space<vmem>>, vector<18x128xf32>
      tpu.vector_store %arg7[%c0_26, %c0_27], %49 {strides = array<i32>} : memref<18x128xf32, #tpu.memory_space<vmem>>, vector<18x128xf32>,
    } else {
    }
    %c0 = arith.constant 0 : index
    %c0_1 = arith.constant 0 : index
    %3 = vector.load %arg2[%c0, %c0_1] : memref<18x128xf32, #tpu.memory_space<vmem>>, vector<18x128xf32>
    %c0_2 = arith.constant 0 : index
    %c0_3 = arith.constant 0 : index
    %4 = vector.load %arg3[%c0_2, %c0_3] : memref<1x128xi32, #tpu.memory_space<vmem>>, vector<1x128xi32>
    %cst = arith.constant dense<0xFF800000> : vector<128xf32>
    %5 = vector.multi_reduction <maximumf>, %3, %cst [0] : vector<18x128xf32> to vector<128xf32>
    %6 = vector.shape_cast %5 : vector<128xf32> to vector<1x128xf32>
    %7 = vector.broadcast %6 : vector<1x128xf32> to vector<18x128xf32>
    %8 = arith.subf %3, %7 : vector<18x128xf32>
    %9 = math.exp %8 : vector<18x128xf32>
    %cst_4 = arith.constant dense<0.000000e+00> : vector<128xf32>
    %10 = vector.multi_reduction <add>, %9, %cst_4 [0] : vector<18x128xf32> to vector<128xf32>
    %11 = vector.shape_cast %10 : vector<128xf32> to vector<1x128xf32>
    %12 = tpu.reciprocal %11 : vector<1x128xf32> -> vector<1x128xf32>
    %13 = vector.broadcast %12 : vector<1x128xf32> to vector<18x128xf32>
    %14 = arith.mulf %9, %13 : vector<18x128xf32>
    %15 = tpu.iota {dimensions = array<i32: 0>} : vector<18x128xi32>
    %16 = vector.broadcast %4 : vector<1x128xi32> to vector<18x128xi32>
    %17 = arith.cmpi eq, %15, %16 : vector<18x128xi32>
    %18 = arith.extui %17 : vector<18x128xi1> to vector<18x128xi32>
    %19 = arith.sitofp %18 : vector<18x128xi32> to vector<18x128xf32>
    %c1_i32 = arith.constant 1 : i32
    %20 = arith.muli %arg0, %c1_i32 : i32
    %21 = arith.addi %20, %arg1 : i32
    %c128_i32 = arith.constant 128 : i32
    %22 = arith.muli %21, %c128_i32 : i32
    %23 = tpu.iota {dimensions = array<i32: 1>} : vector<1x128xi32>
    %24 = vector.broadcast %22 : i32 to vector<1x128xi32>
    %25 = arith.addi %24, %23 : vector<1x128xi32>
    %c8_i32 = arith.constant 8 : i32
    %26 = vector.broadcast %c8_i32 : i32 to vector<1x128xi32>
    %27 = arith.cmpi slt, %25, %26 : vector<1x128xi32>
    %28 = arith.extui %27 : vector<1x128xi1> to vector<1x128xi32>
    %29 = arith.sitofp %28 : vector<1x128xi32> to vector<1x128xf32>
    %30 = vector.broadcast %29 : vector<1x128xf32> to vector<18x128xf32>
    %31 = arith.mulf %14, %30 : vector<18x128xf32>
    %c0_5 = arith.constant 0 : index
    %c0_6 = arith.constant 0 : index
    %32 = vector.load %arg5[%c0_5, %c0_6] : memref<18x128xf32, #tpu.memory_space<vmem>>, vector<18x128xf32>
    %33 = arith.mulf %19, %31 : vector<18x128xf32>
    %34 = arith.addf %32, %33 : vector<18x128xf32>
    %c0_7 = arith.constant 0 : index
    %c0_8 = arith.constant 0 : index
    %35 = vector.load %arg5[%c0_7, %c0_8] : memref<18x128xf32, #tpu.memory_space<vmem>>, vector<18x128xf32>
    tpu.vector_store %arg5[%c0_7, %c0_8], %34 {strides = array<i32>} : memref<18x128xf32, #tpu.memory_space<vmem>>, vector<18x128xf32>,
    %c0_9 = arith.constant 0 : index
    %c0_10 = arith.constant 0 : index
    %36 = vector.load %arg6[%c0_9, %c0_10] : memref<18x128xf32, #tpu.memory_space<vmem>>, vector<18x128xf32>
    %37 = arith.addf %36, %31 : vector<18x128xf32>
    %c0_11 = arith.constant 0 : index
    %c0_12 = arith.constant 0 : index
    %38 = vector.load %arg6[%c0_11, %c0_12] : memref<18x128xf32, #tpu.memory_space<vmem>>, vector<18x128xf32>
    tpu.vector_store %arg6[%c0_11, %c0_12], %37 {strides = array<i32>} : memref<18x128xf32, #tpu.memory_space<vmem>>, vector<18x128xf32>,
    %c0_13 = arith.constant 0 : index
    %c0_14 = arith.constant 0 : index
    %39 = vector.load %arg7[%c0_13, %c0_14] : memref<18x128xf32, #tpu.memory_space<vmem>>, vector<18x128xf32>
    %40 = arith.addf %39, %19 : vector<18x128xf32>
    %c0_15 = arith.constant 0 : index
    %c0_16 = arith.constant 0 : index
    %41 = vector.load %arg7[%c0_15, %c0_16] : memref<18x128xf32, #tpu.memory_space<vmem>>, vector<18x128xf32>
    tpu.vector_store %arg7[%c0_15, %c0_16], %40 {strides = array<i32>} : memref<18x128xf32, #tpu.memory_space<vmem>>, vector<18x128xf32>,
    %c0_i32_17 = arith.constant 0 : i32
    %42 = arith.cmpi eq, %arg1, %c0_i32_17 : i32
    %43 = arith.extui %42 : i1 to i32
    %c0_i32_18 = arith.constant 0 : i32
    %44 = arith.cmpi ne, %43, %c0_i32_18 : i32
    scf.if %44 {
      %c0_19 = arith.constant 0 : index
      %c0_20 = arith.constant 0 : index
      %45 = vector.load %arg5[%c0_19, %c0_20] : memref<18x128xf32, #tpu.memory_space<vmem>>, vector<18x128xf32>
      %cst_21 = arith.constant dense<0.000000e+00> : vector<18xf32>
      %46 = vector.multi_reduction <add>, %45, %cst_21 [1] : vector<18x128xf32> to vector<18xf32>
      %47 = vector.shape_cast %46 : vector<18xf32> to vector<18x1xf32>
      %c0_22 = arith.constant 0 : index
      %c0_23 = arith.constant 0 : index
      %c0_24 = arith.constant 0 : index
      %48 = vector.load %arg4[%c0_22, %c0_23, %c0_24] : memref<1x18x3xf32, #tpu.memory_space<vmem>>, vector<1x18x1xf32>
      %49 = vector.shape_cast %48 : vector<1x18x1xf32> to vector<18x1xf32>
      %50 = vector.shape_cast %47 : vector<18x1xf32> to vector<1x18x1xf32>
      tpu.vector_store %arg4[%c0_22, %c0_23, %c0_24], %50 {strides = array<i32>} : memref<1x18x3xf32, #tpu.memory_space<vmem>>, vector<1x18x1xf32>,
      %c0_25 = arith.constant 0 : index
      %c0_26 = arith.constant 0 : index
      %51 = vector.load %arg6[%c0_25, %c0_26] : memref<18x128xf32, #tpu.memory_space<vmem>>, vector<18x128xf32>
      %cst_27 = arith.constant dense<0.000000e+00> : vector<18xf32>
      %52 = vector.multi_reduction <add>, %51, %cst_27 [1] : vector<18x128xf32> to vector<18xf32>
      %53 = vector.shape_cast %52 : vector<18xf32> to vector<18x1xf32>
      %c0_28 = arith.constant 0 : index
      %c0_29 = arith.constant 0 : index
      %c1 = arith.constant 1 : index
      %54 = vector.load %arg4[%c0_28, %c0_29, %c1] : memref<1x18x3xf32, #tpu.memory_space<vmem>>, vector<1x18x1xf32>
      %55 = vector.shape_cast %54 : vector<1x18x1xf32> to vector<18x1xf32>
      %56 = vector.shape_cast %53 : vector<18x1xf32> to vector<1x18x1xf32>
      tpu.vector_store %arg4[%c0_28, %c0_29, %c1], %56 {strides = array<i32>} : memref<1x18x3xf32, #tpu.memory_space<vmem>>, vector<1x18x1xf32>,
      %c0_30 = arith.constant 0 : index
      %c0_31 = arith.constant 0 : index
      %57 = vector.load %arg7[%c0_30, %c0_31] : memref<18x128xf32, #tpu.memory_space<vmem>>, vector<18x128xf32>
      %cst_32 = arith.constant dense<0.000000e+00> : vector<18xf32>
      %58 = vector.multi_reduction <add>, %57, %cst_32 [1] : vector<18x128xf32> to vector<18xf32>
      %59 = vector.shape_cast %58 : vector<18xf32> to vector<18x1xf32>
      %c0_33 = arith.constant 0 : index
      %c0_34 = arith.constant 0 : index
      %c2 = arith.constant 2 : index
      %60 = vector.load %arg4[%c0_33, %c0_34, %c2] : memref<1x18x3xf32, #tpu.memory_space<vmem>>, vector<1x18x1xf32>
      %61 = vector.shape_cast %60 : vector<1x18x1xf32> to vector<18x1xf32>
      %62 = vector.shape_cast %59 : vector<18x1xf32> to vector<1x18x1xf32>
      tpu.vector_store %arg4[%c0_33, %c0_34, %c2], %62 {strides = array<i32>} : memref<1x18x3xf32, #tpu.memory_space<vmem>>, vector<1x18x1xf32>,
    } else {
    }
    return
  }
  func.func @transform_0(%arg0: i32, %arg1: i32) -> (i32, i32) {
    %c1_i32 = arith.constant 1 : i32
    %0 = arith.muli %arg0, %c1_i32 : i32
    %1 = arith.addi %0, %arg1 : i32
    %c0_i32 = arith.constant 0 : i32
    %c0_i32_0 = arith.constant 0 : i32
    return %c0_i32, %1 : i32, i32
  }
  func.func @transform_1(%arg0: i32, %arg1: i32) -> (i32, i32) {
    %c1_i32 = arith.constant 1 : i32
    %0 = arith.muli %arg0, %c1_i32 : i32
    %1 = arith.addi %0, %arg1 : i32
    %c0_i32 = arith.constant 0 : i32
    %c0_i32_0 = arith.constant 0 : i32
    return %c0_i32, %1 : i32, i32
  }
  func.func @transform_2(%arg0: i32, %arg1: i32) -> (i32, i32, i32) {
    %c0_i32 = arith.constant 0 : i32
    %c0_i32_0 = arith.constant 0 : i32
    %c0_i32_1 = arith.constant 0 : i32
    return %arg0, %c0_i32, %c0_i32_0 : i32, i32, i32
  }
}

</mosaic_0001>

<llo_original>
// kernel: tpu_custom_call.1
$region0: #{tpu_custom_call.1}
  #allocation0 [shape = 'u32[]', space=smem, size = 0x4, offset = 0x4, fixed_abs, tag = 'smem constant byte address 0x4 - core index']
  #allocation1 [shape = 'u32[144,128]{1,0:T(1,128)}', space=vmem, size = 0x12000, scoped, tag = 'internal scratch']
  #allocation2 [shape = 'f32[18,128]{1,0:T(8,128)}', space=vmem, size = 0x3000, scoped, tag = 'scratch operand']
  #allocation3 [shape = 'f32[18,128]{1,0:T(8,128)}', space=vmem, size = 0x3000, scoped, tag = 'scratch operand']
  #allocation4 [shape = 'f32[18,128]{1,0:T(8,128)}', space=vmem, size = 0x3000, scoped, tag = 'scratch operand']
  %s0 = inlined_call_operand.hbm [shape: f32[18,128], index: 0, kind: input, shape index: {}]
  %s1 = inlined_call_operand.vmem [shape: s32[1,128], index: 1, kind: input, shape index: {}]
  %s2 = inlined_call_operand.vmem [shape: f32[1,18,3], index: 2, kind: output, shape index: {}]
  %s3 = sld [smem:[#allocation0]]
  $region30: #{tpu_custom_call.1} parent=0
    _
  %s5 = ssub.s32 1, %s3
  %s6 = scalar_select 0, %s5, %s3
  $region1: #{tpu_custom_call.1} parent=0
    #allocation5 [shape = 'u8[12288]{0}', space=vmem, size = 0x3000, scoped, tag = 'input window, operand 0, single buffered']
    #allocation6 [shape = 's32[1]{0}', space=sflag, size = 0x4, scoped, tag = 'scoped memory for tpu_custom_call.1']
    %7 = vsyncpa [#allocation6], 0
    // Predicated region
    $region2: #{tpu_custom_call.1} parent=1 // pred_check
      _
    $region3: #{tpu_custom_call.1} parent=1 // pred_check_branch
      %9 = sbr.rel (0) target = $region5
    $region4: #{tpu_custom_call.1} parent=1 // pred_region
      %s10 = sadd.s32 0, 0
      %s12 = ssub.s32 384, 384
      %13 = vsyncadd [#allocation6], %s12
      %s14 = smul.addr %s10, 128
      %s15 = scalar_lea.hbm %s0, %s14
      %s16 = sshll.u32 [#allocation5], 4
      %s17 = int_to_ptr.vmem [resolvable:$true] %s16
      %22 = dma.hbm_to_vmem [thread:$0]  %s15, 384, %s17, [#allocation6], 128, 128, 8
    $region5: #{tpu_custom_call.1} parent=1 // pred_fallthru
      _
    // Predicated region
    $region6: #{tpu_custom_call.1} parent=1 // pred_check
      _
    $region7: #{tpu_custom_call.1} parent=1 // pred_check_branch
      %24 = sbr.rel (0) target = $region9
    $region8: #{tpu_custom_call.1} parent=1 // pred_region
      %s25 = sadd.s32 0, 0
      %p26 = scmp.lt.s32.totalorder %s25, 0
      %s27 = scalar_select %p26, %s25, 0
      %s28 = scalar_lea.vmem %s1, %s27
      %s29 = sadd.s32 0, 0
    $region9: #{tpu_custom_call.1} parent=1 // pred_fallthru
      _
    // Predicated region
    $region10: #{tpu_custom_call.1} parent=1 // pred_check
      _
    $region11: #{tpu_custom_call.1} parent=1 // pred_check_branch
      %31 = sbr.rel (0) target = $region13
    $region12: #{tpu_custom_call.1} parent=1 // pred_region
      %32 = dma.done [#allocation6], 384
    $region13: #{tpu_custom_call.1} parent=1 // pred_fallthru
      _
    %s33 = sadd.s32 0, 0
    %p34 = scmp.lt.s32.totalorder %s33, 0
    %s35 = scalar_select %p34, %s33, 0
    %s36 = scalar_lea.vmem %s1, %s35
    %s37 = sadd.s32 0, 0
    %s38 = sadd.s32 0, 0
    %p39 = scmp.lt.s32.totalorder %s38, 0
    %s40 = scalar_select %p39, %s38, 0
    %s41 = scalar_lea.vmem %s1, %s40
    %s42 = sadd.s32 0, 0
    %p43 = scmp.eq.s32.totalorder 0, 0
    // Predicated region
    $region14: #{tpu_custom_call.1} parent=1 // pred_check
      %p44 = pneg %p43
    $region15: #{tpu_custom_call.1} parent=1 // pred_check_branch
      %46 = sbr.rel (%p44) target = $region17
    $region16: #{tpu_custom_call.1} parent=1 // pred_region
      %47 = vst [vmem:[#allocation2] sm:$0xff] 0.0
      %48 = vst [vmem:[#allocation2 + $0x8] sm:$0xff] 0.0
      %49 = vst [vmem:[#allocation2 + $0x10] sm:$0x3] 0.0
      %50 = vst [vmem:[#allocation3] sm:$0xff] 0.0
      %51 = vst [vmem:[#allocation3 + $0x8] sm:$0xff] 0.0
      %52 = vst [vmem:[#allocation3 + $0x10] sm:$0x3] 0.0
      %53 = vst [vmem:[#allocation4] sm:$0xff] 0.0
      %54 = vst [vmem:[#allocation4 + $0x8] sm:$0xff] 0.0
      %55 = vst [vmem:[#allocation4 + $0x10] sm:$0x3] 0.0
    $region17: #{tpu_custom_call.1} parent=1 // pred_fallthru
      _
    %v56 = vld [vmem:[#allocation5] sm:$0xff]
    %v57 = vld [vmem:[#allocation5 + $0x8] sm:$0xff]
    %v58 = vld [vmem:[#allocation5 + $0x10] sm:$0x3]
    %v59 = vld [vmem:[%s41] sm:$0x1]
    %vm60 = vcmask 1041408
    %v61 = vsel %vm60, %v58, -inf
    %v62 = vmax.f32 %v56, %v57
    %v63 = vmax.f32 %v62, %v61
    %v64 = vrot.slane %v63, 4
    %v65 = vmax.f32 %v63, %v64
    %v66 = vrot.slane %v65, 2
    %v67 = vmax.f32 %v65, %v66
    %v68 = vrot.slane %v67, 1
    %v69 = vmax.f32 %v67, %v68
    %v70 = vsub.f32 %v56, %v69
    %v71 = vsub.f32 %v57, %v69
    %v72 = vsub.f32 %v58, %v69
    %v73 = vmul.f32 %v70, 1.442695
    %v74 = vpow.pop %v73
    %v75 = vmul.f32 %v71, 1.442695
    %v76 = vpow.pop %v75
    %v77 = vmul.f32 %v72, 1.442695
    %v78 = vpow.pop %v77
    %v79 = vadd.f32 %v74, %v76
    %v80 = vsel %vm60, %v78, 0.0
    %v81 = vadd.f32 %v79, %v80
    %v82 = vrot.slane %v81, 4
    %v83 = vadd.f32 %v81, %v82
    %v84 = vrot.slane %v83, 2
    %v85 = vadd.f32 %v83, %v84
    %v86 = vrot.slane %v85, 1
    %v87 = vadd.f32 %v85, %v86
    %v88 = vrcp.pop %v87
    %v89 = vmul.f32 %v74, %v88
    %v90 = vmul.f32 %v76, %v88
    %v91 = vmul.f32 %v78, %v88
    %v92 = vlaneseq
    %v93 = vshrl.u32 %v92, 7
    %v94 = vadd.s32 %v93, 8
    %v95 = vadd.s32 %v93, 16
    %v96 = vlaneseq
    %v97 = vshrl.u32 %v96, 7
    %v98 = vsub.s32 0, %v97
    %v99 = vrot.slane %v59, %v98
    %vm100 = vcmp.eq.s32.totalorder %v93, %v99
    %vm101 = vcmp.eq.s32.totalorder %v94, %v99
    %vm102 = vcmp.eq.s32.totalorder %v95, %v99
    %v103 = vsel %vm100, 1, 0
    %v104 = vsel %vm101, 1, 0
    %v105 = vsel %vm102, 1, 0
    %v106 = vcvt.s32.f32 %v103
    %v107 = vcvt.s32.f32 %v104
    %v108 = vcvt.s32.f32 %v105
    %s109 = sadd.s32 0, 0
    %s110 = smul.u32 %s109, 128
    %v111 = vlaneseq
    %v112 = vand.u32 %v111, 127
    %v113 = vstv %s110
    %v114 = vadd.s32 %v113, %v112
    %vm115 = vcmp.lt.s32.totalorder %v114, 8
    %v116 = vsel %vm115, 1, 0
    %v117 = vcvt.s32.f32 %v116
    %v118 = vmul.f32 %v89, %v117
    %v119 = vmul.f32 %v90, %v117
    %v120 = vmul.f32 %v91, %v117
    %v121 = vld [vmem:[#allocation2] sm:$0xff]
    %v122 = vld [vmem:[#allocation2 + $0x8] sm:$0xff]
    %v123 = vld [vmem:[#allocation2 + $0x10] sm:$0x3]
    %v124 = vmul.f32 %v106, %v118
    %v125 = vmul.f32 %v107, %v119
    %v126 = vmul.f32 %v108, %v120
    %v127 = vadd.f32 %v121, %v124
    %v128 = vadd.f32 %v122, %v125
    %v129 = vadd.f32 %v123, %v126
    %130 = vst [vmem:[#allocation2] sm:$0xff] %v127
    %131 = vst [vmem:[#allocation2 + $0x8] sm:$0xff] %v128
    %132 = vst [vmem:[#allocation2 + $0x10] sm:$0x3] %v129
    %v133 = vld [vmem:[#allocation3] sm:$0xff]
    %v134 = vld [vmem:[#allocation3 + $0x8] sm:$0xff]
    %v135 = vld [vmem:[#allocation3 + $0x10] sm:$0x3]
    %v136 = vadd.f32 %v133, %v118
    %v137 = vadd.f32 %v134, %v119
    %v138 = vadd.f32 %v135, %v120
    %139 = vst [vmem:[#allocation3] sm:$0xff] %v136
    %140 = vst [vmem:[#allocation3 + $0x8] sm:$0xff] %v137
    %141 = vst [vmem:[#allocation3 + $0x10] sm:$0x3] %v138
    %v142 = vld [vmem:[#allocation4] sm:$0xff]
    %v143 = vld [vmem:[#allocation4 + $0x8] sm:$0xff]
    %v144 = vld [vmem:[#allocation4 + $0x10] sm:$0x3]
    %v145 = vadd.f32 %v142, %v106
    %v146 = vadd.f32 %v143, %v107
    %v147 = vadd.f32 %v144, %v108
    %148 = vst [vmem:[#allocation4] sm:$0xff] %v145
    %149 = vst [vmem:[#allocation4 + $0x8] sm:$0xff] %v146
    %150 = vst [vmem:[#allocation4 + $0x10] sm:$0x3] %v147
    // Predicated region
    $region18: #{tpu_custom_call.1} parent=1 // pred_check
      %p151 = pneg %p43
    $region19: #{tpu_custom_call.1} parent=1 // pred_check_branch
      %153 = sbr.rel (%p151) target = $region21
    $region20: #{tpu_custom_call.1} parent=1 // pred_region
      %v154 = vld [vmem:[#allocation2] sm:$0xff]
      %v155 = vld [vmem:[#allocation2 + $0x8] sm:$0xff]
      %v156 = vld [vmem:[#allocation2 + $0x10] sm:$0x3]
      %157 = vadd.xlane.f32.xlu0 %v154
      %v158 = vpop.xlane.xlu0 %157
      %159 = vadd.xlane.f32.xlu0 %v155
      %v160 = vpop.xlane.xlu0 %159
      %v161 = vsel %vm60, %v156, 0.0
      %162 = vadd.xlane.f32.xlu0 %v161
      %v163 = vpop.xlane.xlu0 %162
      %vm164 = vcmask 7168
      %165 = vst.msk [vmem:[%s2] sm:$0xff] %vm164, %v158
      %166 = vst.msk [vmem:[%s2 + $0x8] sm:$0xff] %vm164, %v160
      %vm167 = vcmask 1024
      %168 = vst.msk [vmem:[%s2 + $0x10] sm:$0x3] %vm167, %v163
      %v169 = vld [vmem:[#allocation3] sm:$0xff]
      %v170 = vld [vmem:[#allocation3 + $0x8] sm:$0xff]
      %v171 = vld [vmem:[#allocation3 + $0x10] sm:$0x3]
      %172 = vadd.xlane.f32.xlu0 %v169
      %v173 = vpop.xlane.xlu0 %172
      %174 = vadd.xlane.f32.xlu0 %v170
      %v175 = vpop.xlane.xlu0 %174
      %v176 = vsel %vm60, %v171, 0.0
      %177 = vadd.xlane.f32.xlu0 %v176
      %v178 = vpop.xlane.xlu0 %177
      %vm179 = vcmask 15368
      %180 = vst.msk [vmem:[%s2] sm:$0xff] %vm179, %v173
      %181 = vst.msk [vmem:[%s2 + $0x8] sm:$0xff] %vm179, %v175
      %vm182 = vcmask 9224
      %183 = vst.msk [vmem:[%s2 + $0x10] sm:$0x3] %vm182, %v178
      %v184 = vld [vmem:[#allocation4] sm:$0xff]
      %v185 = vld [vmem:[#allocation4 + $0x8] sm:$0xff]
      %v186 = vld [vmem:[#allocation4 + $0x10] sm:$0x3]
      %187 = vadd.xlane.f32.xlu0 %v184
      %v188 = vpop.xlane.xlu0 %187
      %189 = vadd.xlane.f32.xlu0 %v185
      %v190 = vpop.xlane.xlu0 %189
      %v191 = vsel %vm60, %v186, 0.0
      %192 = vadd.xlane.f32.xlu0 %v191
      %v193 = vpop.xlane.xlu0 %192
      %vm194 = vcmask 23568
      %195 = vst.msk [vmem:[%s2] sm:$0xff] %vm194, %v188
      %196 = vst.msk [vmem:[%s2 + $0x8] sm:$0xff] %vm194, %v190
      %vm197 = vcmask 17424
      %198 = vst.msk [vmem:[%s2 + $0x10] sm:$0x3] %vm197, %v193
    $region21: #{tpu_custom_call.1} parent=1 // pred_fallthru
      _
    // Predicated region
    $region22: #{tpu_custom_call.1} parent=1 // pred_check
      _
    $region23: #{tpu_custom_call.1} parent=1 // pred_check_branch
      %200 = sbr.rel (0) target = $region25
    $region24: #{tpu_custom_call.1} parent=1 // pred_region
      _
    $region25: #{tpu_custom_call.1} parent=1 // pred_fallthru
      _
    // Predicated region
    $region26: #{tpu_custom_call.1} parent=1 // pred_check
      _
    $region27: #{tpu_custom_call.1} parent=1 // pred_check_branch
      %202 = sbr.rel (0) target = $region29
    $region28: #{tpu_custom_call.1} parent=1 // pred_region
      _
    $region29: #{tpu_custom_call.1} parent=1 // pred_fallthru
      _
    %203 = vsyncpa [#allocation6], 1

</llo_original>
